<compile_context>
chip_gen: v6e
topology: v6e:2x2x1
jax: 0.10.0
libtpu: 0.0.40
codegen_flags: <defaults>
</compile_context>

<pallas_src>
import functools

import jax
import jax.numpy as jnp
from jax.experimental import pallas as pl
from jax.experimental.pallas import tpu as pltpu

FEATURE_DIM = 128   # backbone feature dim C (real resnet50 would be 2048)
HID_DIM = 128       # args.hid_dim
OUT_DIM = 128       # args.dim
LN_EPS = 1e-6

_LANE = 128
_SUBLANE = 8        # f32 sublane granularity
_SUBLANE_BF16 = 16  # bf16 sublane packing granularity

# pvec packing stacks b1,g1,be1,b2,g2,be2,b3 into one (8,128) slab; it would
# mis-slice if the head dims ever diverge, so pin them here.
assert HID_DIM == OUT_DIM == 128 and FEATURE_DIM == 128


def _round_up(x, m):
    return ((x + m - 1) // m) * m


def _cdiv(a, b):
    return (a + b - 1) // b


def _vmem_capacity_bytes():
    try:
        return int(pltpu.get_tpu_info().vmem_capacity_bytes)
    except Exception:
        return 64 * 1024 * 1024   # conservative fallback (v7x per-core VMEM)


# ----------------------------------------------------------------------------
# Fused kernel: GAP (spatial f32 sum over sublanes, static 1/(H*W) scale) then
# Linear -> LN -> ReLU -> (Dropout p=0) -> Linear -> LN -> ReLU -> Linear
# -> Identity norm.
# ----------------------------------------------------------------------------
def _twist_fused_kernel(x_ref, w1_ref, w2_ref, w3_ref, pvec_ref,
                        o_ref, gap_ref, *, inv_hw):
    s = pl.program_id(1)

    @pl.when(s == 0)
    def _():
        gap_ref[...] = jnp.zeros_like(gap_ref)

    # Channels-last bf16 tile: 128 lanes full, spatial runs over sublanes.
    # Accumulate in f32 (exact sum of bf16 values).
    gap_ref[...] += jnp.sum(x_ref[...].astype(jnp.float32), axis=1)

    @pl.when(s == pl.num_programs(1) - 1)
    def _():
        def layernorm(h, gamma, beta):
            mu = jnp.mean(h, axis=-1, keepdims=True)
            var = jnp.mean(jnp.square(h - mu), axis=-1, keepdims=True)
            return (h - mu) * jax.lax.rsqrt(var + LN_EPS) * gamma + beta

        p = pvec_ref[...]                       # (8, 128) packed param slab
        b1, g1, be1 = p[0:1, :], p[1:2, :], p[2:3, :]
        b2, g2, be2 = p[3:4, :], p[4:5, :], p[5:6, :]
        b3 = p[6:7, :]

        feats = gap_ref[...] * inv_hw           # exact mean: f32 sum * 1/(H*W)
        h = jnp.dot(feats.astype(jnp.bfloat16), w1_ref[...],
                    preferred_element_type=jnp.float32) + b1
        h = jnp.maximum(layernorm(h, g1, be1), 0.0)   # ReLU; Dropout(p=0) == id
        h = jnp.dot(h.astype(jnp.bfloat16), w2_ref[...],
                    preferred_element_type=jnp.float32) + b2
        h = jnp.maximum(layernorm(h, g2, be2), 0.0)
        f = jnp.dot(h.astype(jnp.bfloat16), w3_ref[...],
                    preferred_element_type=jnp.float32) + b3
        o_ref[...] = f                          # self.norm == nn.Identity()


# ----------------------------------------------------------------------------
# Tiling heuristics (per-generation via physical VMEM capacity).
# ----------------------------------------------------------------------------
def _choose_row_tile(n):
    if n <= _SUBLANE:
        return n, n                              # full-dim block, no padding
    if n <= 128:
        # v7x megacore: aim for >= 2 row tiles so both TensorCores get work.
        tile_n = _round_up(_cdiv(n, 2), _SUBLANE)
    else:
        # Keep tile_n <= 128 (head-stage vreg pressure), divisor-aware.
        tile_n = _round_up(_cdiv(n, _cdiv(n, 128)), _SUBLANE)
    return tile_n, _round_up(n, tile_n)


def _choose_spatial_tile(hw, tile_n, cap):
    # Per-block bf16 budget: ~1/10 of physical VMEM leaves room for the x
    # double-buffer + the f32 upcast temp of the reduce + weights/output.
    blk_budget = max(cap // 10, 2 << 20)
    target = blk_budget // (tile_n * FEATURE_DIM * 2)
    target = max(_SUBLANE_BF16, min(target, 2048))
    if hw <= target:
        return hw, hw                            # one full-extent chunk, no pad
    n_chunks = _cdiv(hw, target)
    hw_tile = _round_up(_cdiv(hw, n_chunks), _SUBLANE_BF16)
    return hw_tile, _round_up(hw, hw_tile)


@functools.lru_cache(maxsize=None)
def _build_gap_head_call(n, hw):
    cap = _vmem_capacity_bytes()
    tile_n, n_pad = _choose_row_tile(n)
    hw_tile, hw_pad = _choose_spatial_tile(hw, tile_n, cap)
    grid = (n_pad // tile_n, hw_pad // hw_tile)

    # Explicit VMEM budget: bf16 x double-buffer + f32 reduce temp + weights
    # (double-buffered) + output double-buffer + pvec + gap scratch.
    x_bytes = 2 * tile_n * hw_tile * FEATURE_DIM * 2
    red_tmp = 2 * tile_n * hw_tile * FEATURE_DIM * 2
    w_elems = FEATURE_DIM * HID_DIM + HID_DIM * HID_DIM + HID_DIM * OUT_DIM
    w_bytes = 2 * w_elems * 2
    out_bytes = 2 * tile_n * OUT_DIM * 4
    misc = 2 * 8 * HID_DIM * 4 + tile_n * FEATURE_DIM * 4
    computed = x_bytes + red_tmp + w_bytes + out_bytes + misc
    vmem_limit = min(max(int(computed * 1.25) + (4 << 20), 32 << 20),
                     max(cap - (8 << 20), 16 << 20))

    flops = n_pad * hw_pad * FEATURE_DIM + 2 * n_pad * w_elems
    bytes_accessed = (n_pad * hw_pad * FEATURE_DIM * 2       # bf16 x stream
                      + n_pad * OUT_DIM * 4 + w_elems * 2 + 8 * HID_DIM * 4)
    cost = pl.CostEstimate(flops=flops, transcendentals=4 * n_pad,
                           bytes_accessed=bytes_accessed)

    kernel = functools.partial(_twist_fused_kernel, inv_hw=1.0 / float(hw))

    call = pl.pallas_call(
        kernel,
        grid=grid,
        in_specs=[
            # streamed bf16 input tile (the only large HBM traffic)
            pl.BlockSpec((tile_n, hw_tile, FEATURE_DIM), lambda i, s: (i, s, 0)),
            # resident parameters (constant index_maps -> revisited, not re-DMA'd)
            pl.BlockSpec((FEATURE_DIM, HID_DIM), lambda i, s: (0, 0)),
            pl.BlockSpec((HID_DIM, HID_DIM), lambda i, s: (0, 0)),
            pl.BlockSpec((HID_DIM, OUT_DIM), lambda i, s: (0, 0)),
            pl.BlockSpec((8, HID_DIM), lambda i, s: (0, 0)),
        ],
        out_specs=pl.BlockSpec((tile_n, OUT_DIM), lambda i, s: (i, 0)),
        out_shape=jax.ShapeDtypeStruct((n_pad, OUT_DIM), jnp.float32),
        scratch_shapes=[pltpu.VMEM((tile_n, FEATURE_DIM), jnp.float32)],
        compiler_params=pltpu.CompilerParams(
            dimension_semantics=("parallel", "arbitrary"),
            vmem_limit_bytes=int(vmem_limit)),
        cost_estimate=cost,
    )
    return call, n_pad, hw_pad


def _gap_head(g_bf16, prepped):
    """g_bf16: [N, HW, C] bf16 channels-last (free reshape of an NHWC crop)."""
    n, hw, c = g_bf16.shape
    assert c == FEATURE_DIM
    call, n_pad, hw_pad = _build_gap_head_call(n, hw)
    if n_pad != n or hw_pad != hw:
        # Residual padding (<= one row tile / one sublane group) — zeros do not
        # change the spatial sum; padded rows are sliced off below.
        g_bf16 = jnp.pad(g_bf16, ((0, n_pad - n), (0, hw_pad - hw), (0, 0)))
    out = call(g_bf16, prepped["w1"], prepped["w2"], prepped["w3"],
               prepped["pvec"])
    return out[:n] if n_pad != n else out


def _prepare_params(params):
    # bf16 operands for the MXU; LN/bias vectors packed lane-dense once.
    pvec = jnp.concatenate(
        [params["b1"], params["g1"], params["be1"],
         params["b2"], params["g2"], params["be2"],
         params["b3"], jnp.zeros((1, OUT_DIM), jnp.float32)], axis=0)
    return {
        "w1": params["w1"].astype(jnp.bfloat16),
        "w2": params["w2"].astype(jnp.bfloat16),
        "w3": params["w3"].astype(jnp.bfloat16),
        "pvec": pvec,
    }


# ----------------------------------------------------------------------------
# TWIST forward.  Crops are NHWC (natural JAX layout).  The original module
# groups same-resolution crops before the backbone (torch.unique_consecutive
# on shape[-1]); because the GAP backbone stand-in and the projection head are
# per-row, processing each crop tensor separately and concatenating outputs in
# order is mathematically identical and avoids materializing a concatenated /
# zero-padded input slab in HBM.
# ----------------------------------------------------------------------------
def twist_forward(x, params):
    if not isinstance(x, (list, tuple)):
        x = [x]
    prepped = _prepare_params(params)
    outs = []
    for inp in x:
        ng, h, w, c = inp.shape                  # NHWC
        g = inp.reshape(ng, h * w, c)            # free reshape (channels-last)
        if g.dtype != jnp.bfloat16:
            g = g.astype(jnp.bfloat16)           # no-op if backbone emits bf16
        outs.append(_gap_head(g, prepped))
    return outs[0] if len(outs) == 1 else jnp.concatenate(outs, axis=0)


# ----------------------------------------------------------------------------
# Deterministic parameter init (vit init: trunc_normal std=0.02, bias=0).
# Weights stored as [in, out] (transpose of torch's [out, in]): y = x @ W + b.
# ----------------------------------------------------------------------------
def init_params(key):
    k1, k2, k3 = jax.random.split(key, 3)

    def trunc(k, shape):
        return 0.02 * jax.random.truncated_normal(k, -2.0, 2.0, shape, jnp.float32)

    return {
        "w1": trunc(k1, (FEATURE_DIM, HID_DIM)),
        "b1": jnp.zeros((1, HID_DIM), jnp.float32),
        "g1": jnp.ones((1, HID_DIM), jnp.float32),
        "be1": jnp.zeros((1, HID_DIM), jnp.float32),
        "w2": trunc(k2, (HID_DIM, HID_DIM)),
        "b2": jnp.zeros((1, HID_DIM), jnp.float32),
        "g2": jnp.ones((1, HID_DIM), jnp.float32),
        "be2": jnp.zeros((1, HID_DIM), jnp.float32),
        "w3": trunc(k3, (HID_DIM, OUT_DIM)),
        "b3": jnp.zeros((1, OUT_DIM), jnp.float32),
    }


# Pure-JAX f32 reference for a tolerance check (bf16 matmul operands in kernel).
def _reference_forward(x, params):
    feats = [jnp.mean(inp.astype(jnp.float32).reshape(inp.shape[0], -1,
                                                      inp.shape[-1]), axis=1)
             for inp in x]
    f = jnp.concatenate(feats, axis=0)

    def ln(h, g, b):
        mu = jnp.mean(h, axis=-1, keepdims=True)
        var = jnp.mean(jnp.square(h - mu), axis=-1, keepdims=True)
        return (h - mu) * jax.lax.rsqrt(var + LN_EPS) * g + b

    h = f @ params["w1"] + params["b1"]
    h = jnp.maximum(ln(h, params["g1"], params["be1"]), 0.0)
    h = h @ params["w2"] + params["b2"]
    h = jnp.maximum(ln(h, params["g2"], params["be2"]), 0.0)
    return h @ params["w3"] + params["b3"]


if __name__ == "__main__":
    key = jax.random.PRNGKey(0)
    kp, k1, k2, k3, k4 = jax.random.split(key, 5)

    B = 2  # per-crop batch
    # multi-crop input: two "global" crops (16x16) + two "local" crops (8x8),
    # NHWC, bf16 (what a JAX backbone would naturally hand over).
    x = [
        jax.random.normal(k1, (B, 16, 16, FEATURE_DIM), jnp.float32).astype(jnp.bfloat16),
        jax.random.normal(k2, (B, 16, 16, FEATURE_DIM), jnp.float32).astype(jnp.bfloat16),
        jax.random.normal(k3, (B, 8, 8, FEATURE_DIM), jnp.float32).astype(jnp.bfloat16),
        jax.random.normal(k4, (B, 8, 8, FEATURE_DIM), jnp.float32).astype(jnp.bfloat16),
    ]

    params = init_params(kp)
    out = jax.block_until_ready(twist_forward(x, params))
    assert out.shape == (4 * B, OUT_DIM) and out.dtype == jnp.float32

    ref = jax.block_until_ready(_reference_forward(x, params))
    err = float(jnp.max(jnp.abs(out - ref)))
    assert err < 5e-2, f"kernel/reference mismatch: max abs err {err}"
    print("KERNEL_OK")
</pallas_src>

<mosaic_0001>
module attributes {stable_mosaic.version = 11 : i64} {
  func.func @_twist_fused_kernel(%arg0: i32, %arg1: i32, %arg2: memref<2x256x128xbf16, #tpu.memory_space<vmem>>, %arg3: memref<128x128xbf16, #tpu.memory_space<vmem>>, %arg4: memref<128x128xbf16, #tpu.memory_space<vmem>>, %arg5: memref<128x128xbf16, #tpu.memory_space<vmem>>, %arg6: memref<8x128xf32, #tpu.memory_space<vmem>>, %arg7: memref<2x128xf32, #tpu.memory_space<vmem>>, %arg8: memref<2x128xf32, #tpu.memory_space<vmem>>) attributes {dimension_semantics = [#tpu.dimension_semantics<parallel>, #tpu.dimension_semantics<arbitrary>], iteration_bounds = array<i64: 1, 1>, scalar_prefetch = 0 : i64, scratch_operands = 1 : i64, tpu.core_type = #tpu.core_type<tc>, window_params = [{transform_indices = @transform_0, window_bounds = array<i64: 2, 256, 128>}, {pipeline_mode = #tpu.pipeline_mode<synchronous>, transform_indices = @transform_1, window_bounds = array<i64: 128, 128>}, {pipeline_mode = #tpu.pipeline_mode<synchronous>, transform_indices = @transform_2, window_bounds = array<i64: 128, 128>}, {pipeline_mode = #tpu.pipeline_mode<synchronous>, transform_indices = @transform_3, window_bounds = array<i64: 128, 128>}, {pipeline_mode = #tpu.pipeline_mode<synchronous>, transform_indices = @transform_4, window_bounds = array<i64: 8, 128>}, {transform_indices = @transform_5, window_bounds = array<i64: 2, 128>}]} {
    %c0_i32 = arith.constant 0 : i32
    %0 = arith.cmpi eq, %arg1, %c0_i32 : i32
    %1 = arith.extui %0 : i1 to i32
    %c0_i32_0 = arith.constant 0 : i32
    %2 = arith.cmpi ne, %1, %c0_i32_0 : i32
    scf.if %2 {
      %cst_9 = arith.constant 0.000000e+00 : f32
      %12 = vector.broadcast %cst_9 : f32 to vector<2x128xf32>
      %c0_10 = arith.constant 0 : index
      %c0_11 = arith.constant 0 : index
      %13 = vector.load %arg8[%c0_10, %c0_11] : memref<2x128xf32, #tpu.memory_space<vmem>>, vector<2x128xf32>
      tpu.vector_store %arg8[%c0_10, %c0_11], %12 {strides = array<i32>} : memref<2x128xf32, #tpu.memory_space<vmem>>, vector<2x128xf32>,
    } else {
    }
    %c0 = arith.constant 0 : index
    %c0_1 = arith.constant 0 : index
    %3 = vector.load %arg8[%c0, %c0_1] : memref<2x128xf32, #tpu.memory_space<vmem>>, vector<2x128xf32>
    %c0_2 = arith.constant 0 : index
    %c0_3 = arith.constant 0 : index
    %c0_4 = arith.constant 0 : index
    %4 = vector.load %arg2[%c0_2, %c0_3, %c0_4] : memref<2x256x128xbf16, #tpu.memory_space<vmem>>, vector<2x256x128xbf16>
    %5 = arith.extf %4 : vector<2x256x128xbf16> to vector<2x256x128xf32>
    %cst = arith.constant dense<0.000000e+00> : vector<2x128xf32>
    %6 = vector.multi_reduction <add>, %5, %cst [1] : vector<2x256x128xf32> to vector<2x128xf32>
    %7 = arith.addf %3, %6 : vector<2x128xf32>
    %c0_5 = arith.constant 0 : index
    %c0_6 = arith.constant 0 : index
    %8 = vector.load %arg8[%c0_5, %c0_6] : memref<2x128xf32, #tpu.memory_space<vmem>>, vector<2x128xf32>
    tpu.vector_store %arg8[%c0_5, %c0_6], %7 {strides = array<i32>} : memref<2x128xf32, #tpu.memory_space<vmem>>, vector<2x128xf32>,
    %c0_i32_7 = arith.constant 0 : i32
    %9 = arith.cmpi eq, %arg1, %c0_i32_7 : i32
    %10 = arith.extui %9 : i1 to i32
    %c0_i32_8 = arith.constant 0 : i32
    %11 = arith.cmpi ne, %10, %c0_i32_8 : i32
    scf.if %11 {
      %c0_9 = arith.constant 0 : index
      %c0_10 = arith.constant 0 : index
      %12 = vector.load %arg6[%c0_9, %c0_10] : memref<8x128xf32, #tpu.memory_space<vmem>>, vector<8x128xf32>
      %13 = vector.extract_strided_slice %12 {offsets = [0, 0], sizes = [1, 128], strides = [1, 1]} : vector<8x128xf32> to vector<1x128xf32>
      %14 = vector.extract_strided_slice %12 {offsets = [1, 0], sizes = [1, 128], strides = [1, 1]} : vector<8x128xf32> to vector<1x128xf32>
      %15 = vector.extract_strided_slice %12 {offsets = [2, 0], sizes = [1, 128], strides = [1, 1]} : vector<8x128xf32> to vector<1x128xf32>
      %16 = vector.extract_strided_slice %12 {offsets = [3, 0], sizes = [1, 128], strides = [1, 1]} : vector<8x128xf32> to vector<1x128xf32>
      %17 = vector.extract_strided_slice %12 {offsets = [4, 0], sizes = [1, 128], strides = [1, 1]} : vector<8x128xf32> to vector<1x128xf32>
      %18 = vector.extract_strided_slice %12 {offsets = [5, 0], sizes = [1, 128], strides = [1, 1]} : vector<8x128xf32> to vector<1x128xf32>
      %19 = vector.extract_strided_slice %12 {offsets = [6, 0], sizes = [1, 128], strides = [1, 1]} : vector<8x128xf32> to vector<1x128xf32>
      %c0_11 = arith.constant 0 : index
      %c0_12 = arith.constant 0 : index
      %20 = vector.load %arg8[%c0_11, %c0_12] : memref<2x128xf32, #tpu.memory_space<vmem>>, vector<2x128xf32>
      %cst_13 = arith.constant 3.906250e-03 : f32
      %21 = vector.broadcast %cst_13 : f32 to vector<2x128xf32>
      %22 = arith.mulf %20, %21 : vector<2x128xf32>
      %23 = arith.truncf %22 : vector<2x128xf32> to vector<2x128xbf16>
      %c0_14 = arith.constant 0 : index
      %c0_15 = arith.constant 0 : index
      %24 = vector.load %arg3[%c0_14, %c0_15] : memref<128x128xbf16, #tpu.memory_space<vmem>>, vector<128x128xbf16>
      %cst_16 = arith.constant dense<0.000000e+00> : vector<2x128xf32>
      %25 = tpu.matmul %23, %24, %cst_16 {dimension_numbers = #tpu.dot_dimension_numbers<[1], [0], [0], [1], [0, 0, 1, 1], [], []>} : vector<2x128xbf16>, vector<128x128xbf16>, vector<2x128xf32> -> vector<2x128xf32>
      %26 = vector.broadcast %13 : vector<1x128xf32> to vector<2x128xf32>
      %27 = arith.addf %25, %26 : vector<2x128xf32>
      %cst_17 = arith.constant dense<0.000000e+00> : vector<2xf32>
      %28 = vector.multi_reduction <add>, %27, %cst_17 [1] : vector<2x128xf32> to vector<2xf32>
      %29 = vector.shape_cast %28 : vector<2xf32> to vector<2x1xf32>
      %cst_18 = arith.constant 1.280000e+02 : f32
      %30 = vector.broadcast %cst_18 : f32 to vector<2x1xf32>
      %31 = arith.divf %29, %30 : vector<2x1xf32>
      %32 = vector.broadcast %31 : vector<2x1xf32> to vector<2x128xf32>
      %33 = arith.subf %27, %32 : vector<2x128xf32>
      %34 = arith.mulf %33, %33 : vector<2x128xf32>
      %cst_19 = arith.constant dense<0.000000e+00> : vector<2xf32>
      %35 = vector.multi_reduction <add>, %34, %cst_19 [1] : vector<2x128xf32> to vector<2xf32>
      %36 = vector.shape_cast %35 : vector<2xf32> to vector<2x1xf32>
      %cst_20 = arith.constant 1.280000e+02 : f32
      %37 = vector.broadcast %cst_20 : f32 to vector<2x1xf32>
      %38 = arith.divf %36, %37 : vector<2x1xf32>
      %39 = vector.broadcast %31 : vector<2x1xf32> to vector<2x128xf32>
      %40 = arith.subf %27, %39 : vector<2x128xf32>
      %cst_21 = arith.constant 9.99999997E-7 : f32
      %41 = vector.broadcast %cst_21 : f32 to vector<2x1xf32>
      %42 = arith.addf %38, %41 : vector<2x1xf32>
      %43 = math.rsqrt %42 : vector<2x1xf32>
      %44 = vector.broadcast %43 : vector<2x1xf32> to vector<2x128xf32>
      %45 = arith.mulf %40, %44 : vector<2x128xf32>
      %46 = vector.broadcast %14 : vector<1x128xf32> to vector<2x128xf32>
      %47 = arith.mulf %45, %46 : vector<2x128xf32>
      %48 = vector.broadcast %15 : vector<1x128xf32> to vector<2x128xf32>
      %49 = arith.addf %47, %48 : vector<2x128xf32>
      %cst_22 = arith.constant 0.000000e+00 : f32
      %50 = vector.broadcast %cst_22 : f32 to vector<2x128xf32>
      %51 = arith.maximumf %49, %50 : vector<2x128xf32>
      %52 = arith.truncf %51 : vector<2x128xf32> to vector<2x128xbf16>
      %c0_23 = arith.constant 0 : index
      %c0_24 = arith.constant 0 : index
      %53 = vector.load %arg4[%c0_23, %c0_24] : memref<128x128xbf16, #tpu.memory_space<vmem>>, vector<128x128xbf16>
      %cst_25 = arith.constant dense<0.000000e+00> : vector<2x128xf32>
      %54 = tpu.matmul %52, %53, %cst_25 {dimension_numbers = #tpu.dot_dimension_numbers<[1], [0], [0], [1], [0, 0, 1, 1], [], []>} : vector<2x128xbf16>, vector<128x128xbf16>, vector<2x128xf32> -> vector<2x128xf32>
      %55 = vector.broadcast %16 : vector<1x128xf32> to vector<2x128xf32>
      %56 = arith.addf %54, %55 : vector<2x128xf32>
      %cst_26 = arith.constant dense<0.000000e+00> : vector<2xf32>
      %57 = vector.multi_reduction <add>, %56, %cst_26 [1] : vector<2x128xf32> to vector<2xf32>
      %58 = vector.shape_cast %57 : vector<2xf32> to vector<2x1xf32>
      %cst_27 = arith.constant 1.280000e+02 : f32
      %59 = vector.broadcast %cst_27 : f32 to vector<2x1xf32>
      %60 = arith.divf %58, %59 : vector<2x1xf32>
      %61 = vector.broadcast %60 : vector<2x1xf32> to vector<2x128xf32>
      %62 = arith.subf %56, %61 : vector<2x128xf32>
      %63 = arith.mulf %62, %62 : vector<2x128xf32>
      %cst_28 = arith.constant dense<0.000000e+00> : vector<2xf32>
      %64 = vector.multi_reduction <add>, %63, %cst_28 [1] : vector<2x128xf32> to vector<2xf32>
      %65 = vector.shape_cast %64 : vector<2xf32> to vector<2x1xf32>
      %cst_29 = arith.constant 1.280000e+02 : f32
      %66 = vector.broadcast %cst_29 : f32 to vector<2x1xf32>
      %67 = arith.divf %65, %66 : vector<2x1xf32>
      %68 = vector.broadcast %60 : vector<2x1xf32> to vector<2x128xf32>
      %69 = arith.subf %56, %68 : vector<2x128xf32>
      %cst_30 = arith.constant 9.99999997E-7 : f32
      %70 = vector.broadcast %cst_30 : f32 to vector<2x1xf32>
      %71 = arith.addf %67, %70 : vector<2x1xf32>
      %72 = math.rsqrt %71 : vector<2x1xf32>
      %73 = vector.broadcast %72 : vector<2x1xf32> to vector<2x128xf32>
      %74 = arith.mulf %69, %73 : vector<2x128xf32>
      %75 = vector.broadcast %17 : vector<1x128xf32> to vector<2x128xf32>
      %76 = arith.mulf %74, %75 : vector<2x128xf32>
      %77 = vector.broadcast %18 : vector<1x128xf32> to vector<2x128xf32>
      %78 = arith.addf %76, %77 : vector<2x128xf32>
      %cst_31 = arith.constant 0.000000e+00 : f32
      %79 = vector.broadcast %cst_31 : f32 to vector<2x128xf32>
      %80 = arith.maximumf %78, %79 : vector<2x128xf32>
      %81 = arith.truncf %80 : vector<2x128xf32> to vector<2x128xbf16>
      %c0_32 = arith.constant 0 : index
      %c0_33 = arith.constant 0 : index
      %82 = vector.load %arg5[%c0_32, %c0_33] : memref<128x128xbf16, #tpu.memory_space<vmem>>, vector<128x128xbf16>
      %cst_34 = arith.constant dense<0.000000e+00> : vector<2x128xf32>
      %83 = tpu.matmul %81, %82, %cst_34 {dimension_numbers = #tpu.dot_dimension_numbers<[1], [0], [0], [1], [0, 0, 1, 1], [], []>} : vector<2x128xbf16>, vector<128x128xbf16>, vector<2x128xf32> -> vector<2x128xf32>
      %84 = vector.broadcast %19 : vector<1x128xf32> to vector<2x128xf32>
      %85 = arith.addf %83, %84 : vector<2x128xf32>
      %c0_35 = arith.constant 0 : index
      %c0_36 = arith.constant 0 : index
      %86 = vector.load %arg7[%c0_35, %c0_36] : memref<2x128xf32, #tpu.memory_space<vmem>>, vector<2x128xf32>
      tpu.vector_store %arg7[%c0_35, %c0_36], %85 {strides = array<i32>} : memref<2x128xf32, #tpu.memory_space<vmem>>, vector<2x128xf32>,
    } else {
    }
    return
  }
  func.func @transform_0(%arg0: i32, %arg1: i32) -> (i32, i32, i32) {
    %c0_i32 = arith.constant 0 : i32
    %c0_i32_0 = arith.constant 0 : i32
    return %arg0, %arg1, %c0_i32 : i32, i32, i32
  }
  func.func @transform_1(%arg0: i32, %arg1: i32) -> (i32, i32) {
    %c0_i32 = arith.constant 0 : i32
    %c0_i32_0 = arith.constant 0 : i32
    %c0_i32_1 = arith.constant 0 : i32
    return %c0_i32, %c0_i32_0 : i32, i32
  }
  func.func @transform_2(%arg0: i32, %arg1: i32) -> (i32, i32) {
    %c0_i32 = arith.constant 0 : i32
    %c0_i32_0 = arith.constant 0 : i32
    %c0_i32_1 = arith.constant 0 : i32
    return %c0_i32, %c0_i32_0 : i32, i32
  }
  func.func @transform_3(%arg0: i32, %arg1: i32) -> (i32, i32) {
    %c0_i32 = arith.constant 0 : i32
    %c0_i32_0 = arith.constant 0 : i32
    %c0_i32_1 = arith.constant 0 : i32
    return %c0_i32, %c0_i32_0 : i32, i32
  }
  func.func @transform_4(%arg0: i32, %arg1: i32) -> (i32, i32) {
    %c0_i32 = arith.constant 0 : i32
    %c0_i32_0 = arith.constant 0 : i32
    %c0_i32_1 = arith.constant 0 : i32
    return %c0_i32, %c0_i32_0 : i32, i32
  }
  func.func @transform_5(%arg0: i32, %arg1: i32) -> (i32, i32) {
    %c0_i32 = arith.constant 0 : i32
    %c0_i32_0 = arith.constant 0 : i32
    return %arg0, %c0_i32 : i32, i32
  }
}

</mosaic_0001>

<llo_original>
// kernel: tpu_custom_call.1
$region0: #{tpu_custom_call.1}
  #allocation0 [shape = 'u32[]', space=smem, size = 0x4, offset = 0x4, fixed_abs, tag = 'smem constant byte address 0x4 - core index']
  #allocation1 [shape = 'u32[144,128]{1,0:T(1,128)}', space=vmem, size = 0x12000, scoped, tag = 'internal scratch']
  #allocation2 [shape = 'f32[2,128]{1,0:T(2,128)}', space=vmem, size = 0x400, scoped, tag = 'scratch operand']
  %s0 = inlined_call_operand.hbm [shape: bf16[2,256,128], index: 0, kind: input, shape index: {}]
  %s1 = inlined_call_operand.hbm [shape: bf16[128,128], index: 1, kind: input, shape index: {}]
  %s2 = inlined_call_operand.hbm [shape: bf16[128,128], index: 2, kind: input, shape index: {}]
  %s3 = inlined_call_operand.hbm [shape: bf16[128,128], index: 3, kind: input, shape index: {}]
  %s4 = inlined_call_operand.hbm [shape: f32[8,128], index: 4, kind: input, shape index: {}]
  %s5 = inlined_call_operand.hbm [shape: f32[2,128], index: 5, kind: output, shape index: {}]
  %s6 = sld [smem:[#allocation0]]
  $region58: #{tpu_custom_call.1} parent=0
    _
  %s8 = ssub.s32 1, %s6
  %s9 = scalar_select 0, %s8, %s6
  $region1: #{tpu_custom_call.1} parent=0
    #allocation3 [shape = 'u8[131072]{0}', space=vmem, size = 0x20000, scoped, tag = 'input window, operand 0, single buffered']
    #allocation4 [shape = 's32[1]{0}', space=sflag, size = 0x4, scoped, tag = 'scoped memory for tpu_custom_call.1']
    #allocation5 [shape = 's32[1]{0}', space=sflag, size = 0x4, scoped, tag = 'scoped memory for tpu_custom_call.1']
    #allocation6 [shape = 'u8[32768]{0}', space=vmem, size = 0x8000, scoped, tag = 'input window, operand 1, single buffered']
    #allocation7 [shape = 's32[1]{0}', space=sflag, size = 0x4, scoped, tag = 'scoped memory for tpu_custom_call.1']
    #allocation8 [shape = 'u8[32768]{0}', space=vmem, size = 0x8000, scoped, tag = 'input window, operand 2, single buffered']
    #allocation9 [shape = 'u8[32768]{0}', space=vmem, size = 0x8000, scoped, tag = 'input window, operand 3, single buffered']
    #allocation10 [shape = 's32[1]{0}', space=sflag, size = 0x4, scoped, tag = 'scoped memory for tpu_custom_call.1']
    #allocation11 [shape = 'u8[4096]{0}', space=vmem, size = 0x1000, scoped, tag = 'input window, operand 4, single buffered']
    #allocation12 [shape = 'u8[1024]{0}', space=vmem, size = 0x400, scoped, tag = 'output window, operand 0, single buffered']
    %10 = vsyncpa [#allocation4], 0
    %11 = vsyncpa [#allocation7], 0
    %12 = vsyncpa [#allocation10], 0
    %13 = vsyncpa [#allocation5], 0
    // Predicated region
    $region2: #{tpu_custom_call.1} parent=1 // pred_check
      _
    $region3: #{tpu_custom_call.1} parent=1 // pred_check_branch
      %15 = sbr.rel (0) target = $region5
    $region4: #{tpu_custom_call.1} parent=1 // pred_region
      %s17 = ssub.s32 4096, 4096
      %18 = vsyncadd [#allocation4], %s17
      %s19 = sshll.u32 [#allocation3], 4
      %s20 = int_to_ptr.vmem [resolvable:$true] %s19
      %25 = dma.hbm_to_vmem [thread:$0]  %s0, 4096, %s20, [#allocation4], 64, 64, 4
    $region5: #{tpu_custom_call.1} parent=1 // pred_fallthru
      _
    // Predicated region
    $region6: #{tpu_custom_call.1} parent=1 // pred_check
      _
    $region7: #{tpu_custom_call.1} parent=1 // pred_check_branch
      %27 = sbr.rel (0) target = $region9
    $region8: #{tpu_custom_call.1} parent=1 // pred_region
      %s29 = ssub.s32 1024, 1024
      %30 = vsyncadd [#allocation7], %s29
      %s31 = sshll.u32 [#allocation6], 4
      %s32 = int_to_ptr.vmem [resolvable:$true] %s31
      %37 = dma.hbm_to_vmem [thread:$0]  %s1, 1024, %s32, [#allocation7], 64, 64, 4
    $region9: #{tpu_custom_call.1} parent=1 // pred_fallthru
      _
    // Predicated region
    $region10: #{tpu_custom_call.1} parent=1 // pred_check
      _
    $region11: #{tpu_custom_call.1} parent=1 // pred_check_branch
      %39 = sbr.rel (0) target = $region13
    $region12: #{tpu_custom_call.1} parent=1 // pred_region
      %s41 = ssub.s32 1024, 1024
      %42 = vsyncadd [#allocation7], %s41
      %s43 = sshll.u32 [#allocation8], 4
      %s44 = int_to_ptr.vmem [resolvable:$true] %s43
      %49 = dma.hbm_to_vmem [thread:$0]  %s2, 1024, %s44, [#allocation7], 64, 64, 4
    $region13: #{tpu_custom_call.1} parent=1 // pred_fallthru
      _
    // Predicated region
    $region14: #{tpu_custom_call.1} parent=1 // pred_check
      _
    $region15: #{tpu_custom_call.1} parent=1 // pred_check_branch
      %51 = sbr.rel (0) target = $region17
    $region16: #{tpu_custom_call.1} parent=1 // pred_region
      %s53 = ssub.s32 1024, 1024
      %54 = vsyncadd [#allocation10], %s53
      %s55 = sshll.u32 [#allocation9], 4
      %s56 = int_to_ptr.vmem [resolvable:$true] %s55
      %61 = dma.hbm_to_vmem [thread:$0]  %s3, 1024, %s56, [#allocation10], 64, 64, 4
    $region17: #{tpu_custom_call.1} parent=1 // pred_fallthru
      _
    // Predicated region
    $region18: #{tpu_custom_call.1} parent=1 // pred_check
      _
    $region19: #{tpu_custom_call.1} parent=1 // pred_check_branch
      %63 = sbr.rel (0) target = $region21
    $region20: #{tpu_custom_call.1} parent=1 // pred_region
      %s65 = ssub.s32 128, 128
      %66 = vsyncadd [#allocation10], %s65
      %s68 = sshll.u32 [#allocation11], 4
      %s69 = int_to_ptr.vmem [resolvable:$true] %s68
      %71 = dma.hbm_to_vmem [thread:$0]  %s4, 128, %s69, [#allocation10]
    $region21: #{tpu_custom_call.1} parent=1 // pred_fallthru
      _
    // Predicated region
    $region22: #{tpu_custom_call.1} parent=1 // pred_check
      _
    $region23: #{tpu_custom_call.1} parent=1 // pred_check_branch
      %73 = sbr.rel (0) target = $region25
    $region24: #{tpu_custom_call.1} parent=1 // pred_region
      %74 = dma.done [#allocation4], 4096
    $region25: #{tpu_custom_call.1} parent=1 // pred_fallthru
      _
    // Predicated region
    $region26: #{tpu_custom_call.1} parent=1 // pred_check
      _
    $region27: #{tpu_custom_call.1} parent=1 // pred_check_branch
      %76 = sbr.rel (0) target = $region29
    $region28: #{tpu_custom_call.1} parent=1 // pred_region
      %77 = dma.done [#allocation7], 1024
    $region29: #{tpu_custom_call.1} parent=1 // pred_fallthru
      _
    // Predicated region
    $region30: #{tpu_custom_call.1} parent=1 // pred_check
      _
    $region31: #{tpu_custom_call.1} parent=1 // pred_check_branch
      %79 = sbr.rel (0) target = $region33
    $region32: #{tpu_custom_call.1} parent=1 // pred_region
      %80 = dma.done [#allocation7], 1024
    $region33: #{tpu_custom_call.1} parent=1 // pred_fallthru
      _
    // Predicated region
    $region34: #{tpu_custom_call.1} parent=1 // pred_check
      _
    $region35: #{tpu_custom_call.1} parent=1 // pred_check_branch
      %82 = sbr.rel (0) target = $region37
    $region36: #{tpu_custom_call.1} parent=1 // pred_region
      %83 = dma.done [#allocation10], 1024
    $region37: #{tpu_custom_call.1} parent=1 // pred_fallthru
      _
    // Predicated region
    $region38: #{tpu_custom_call.1} parent=1 // pred_check
      _
    $region39: #{tpu_custom_call.1} parent=1 // pred_check_branch
      %85 = sbr.rel (0) target = $region41
    $region40: #{tpu_custom_call.1} parent=1 // pred_region
      %86 = dma.done [#allocation10], 128
    $region41: #{tpu_custom_call.1} parent=1 // pred_fallthru
      _
    %p88 = scmp.eq.s32.totalorder 0, 0
    // Predicated region
    $region42: #{tpu_custom_call.1} parent=1 // pred_check
      %p89 = pneg %p88
    $region43: #{tpu_custom_call.1} parent=1 // pred_check_branch
      %91 = sbr.rel (%p89) target = $region45
    $region44: #{tpu_custom_call.1} parent=1 // pred_region
      %92 = vst [vmem:[#allocation2] sm:$0x3] 0.0
    $region45: #{tpu_custom_call.1} parent=1 // pred_fallthru
      _
    %v93 = vld [vmem:[#allocation2] sm:$0x3]
    %v94 = vld [vmem:[#allocation3] sm:$0xf]
    %v95 = vld [vmem:[#allocation3 + $0x4] sm:$0xf]
    %v96 = vld [vmem:[#allocation3 + $0x8] sm:$0xf]
    %v97 = vld [vmem:[#allocation3 + $0xc] sm:$0xf]
    %v98 = vld [vmem:[#allocation3 + $0x10] sm:$0xf]
    %v99 = vld [vmem:[#allocation3 + $0x14] sm:$0xf]
    %v100 = vld [vmem:[#allocation3 + $0x18] sm:$0xf]
    %v101 = vld [vmem:[#allocation3 + $0x1c] sm:$0xf]
    %v102 = vld [vmem:[#allocation3 + $0x20] sm:$0xf]
    %v103 = vld [vmem:[#allocation3 + $0x24] sm:$0xf]
    %v104 = vld [vmem:[#allocation3 + $0x28] sm:$0xf]
    %v105 = vld [vmem:[#allocation3 + $0x2c] sm:$0xf]
    %v106 = vld [vmem:[#allocation3 + $0x30] sm:$0xf]
    %v107 = vld [vmem:[#allocation3 + $0x34] sm:$0xf]
    %v108 = vld [vmem:[#allocation3 + $0x38] sm:$0xf]
    %v109 = vld [vmem:[#allocation3 + $0x3c] sm:$0xf]
    %v110 = vld [vmem:[#allocation3 + $0x40] sm:$0xf]
    %v111 = vld [vmem:[#allocation3 + $0x44] sm:$0xf]
    %v112 = vld [vmem:[#allocation3 + $0x48] sm:$0xf]
    %v113 = vld [vmem:[#allocation3 + $0x4c] sm:$0xf]
    %v114 = vld [vmem:[#allocation3 + $0x50] sm:$0xf]
    %v115 = vld [vmem:[#allocation3 + $0x54] sm:$0xf]
    %v116 = vld [vmem:[#allocation3 + $0x58] sm:$0xf]
    %v117 = vld [vmem:[#allocation3 + $0x5c] sm:$0xf]
    %v118 = vld [vmem:[#allocation3 + $0x60] sm:$0xf]
    %v119 = vld [vmem:[#allocation3 + $0x64] sm:$0xf]
    %v120 = vld [vmem:[#allocation3 + $0x68] sm:$0xf]
    %v121 = vld [vmem:[#allocation3 + $0x6c] sm:$0xf]
    %v122 = vld [vmem:[#allocation3 + $0x70] sm:$0xf]
    %v123 = vld [vmem:[#allocation3 + $0x74] sm:$0xf]
    %v124 = vld [vmem:[#allocation3 + $0x78] sm:$0xf]
    %v125 = vld [vmem:[#allocation3 + $0x7c] sm:$0xf]
    %v126 = vld [vmem:[#allocation3 + $0x80] sm:$0xf]
    %v127 = vld [vmem:[#allocation3 + $0x84] sm:$0xf]
    %v128 = vld [vmem:[#allocation3 + $0x88] sm:$0xf]
    %v129 = vld [vmem:[#allocation3 + $0x8c] sm:$0xf]
    %v130 = vld [vmem:[#allocation3 + $0x90] sm:$0xf]
    %v131 = vld [vmem:[#allocation3 + $0x94] sm:$0xf]
    %v132 = vld [vmem:[#allocation3 + $0x98] sm:$0xf]
    %v133 = vld [vmem:[#allocation3 + $0x9c] sm:$0xf]
    %v134 = vld [vmem:[#allocation3 + $0xa0] sm:$0xf]
    %v135 = vld [vmem:[#allocation3 + $0xa4] sm:$0xf]
    %v136 = vld [vmem:[#allocation3 + $0xa8] sm:$0xf]
    %v137 = vld [vmem:[#allocation3 + $0xac] sm:$0xf]
    %v138 = vld [vmem:[#allocation3 + $0xb0] sm:$0xf]
    %v139 = vld [vmem:[#allocation3 + $0xb4] sm:$0xf]
    %v140 = vld [vmem:[#allocation3 + $0xb8] sm:$0xf]
    %v141 = vld [vmem:[#allocation3 + $0xbc] sm:$0xf]
    %v142 = vld [vmem:[#allocation3 + $0xc0] sm:$0xf]
    %v143 = vld [vmem:[#allocation3 + $0xc4] sm:$0xf]
    %v144 = vld [vmem:[#allocation3 + $0xc8] sm:$0xf]
    %v145 = vld [vmem:[#allocation3 + $0xcc] sm:$0xf]
    %v146 = vld [vmem:[#allocation3 + $0xd0] sm:$0xf]
    %v147 = vld [vmem:[#allocation3 + $0xd4] sm:$0xf]
    %v148 = vld [vmem:[#allocation3 + $0xd8] sm:$0xf]
    %v149 = vld [vmem:[#allocation3 + $0xdc] sm:$0xf]
    %v150 = vld [vmem:[#allocation3 + $0xe0] sm:$0xf]
    %v151 = vld [vmem:[#allocation3 + $0xe4] sm:$0xf]
    %v152 = vld [vmem:[#allocation3 + $0xe8] sm:$0xf]
    %v153 = vld [vmem:[#allocation3 + $0xec] sm:$0xf]
    %v154 = vld [vmem:[#allocation3 + $0xf0] sm:$0xf]
    %v155 = vld [vmem:[#allocation3 + $0xf4] sm:$0xf]
    %v156 = vld [vmem:[#allocation3 + $0xf8] sm:$0xf]
    %v157 = vld [vmem:[#allocation3 + $0xfc] sm:$0xf]
    %v158 = vunpack.c.l.bf16 %v94
    %v159 = vunpack.c.l.bf16 %v95
    %v160 = vunpack.c.l.bf16 %v96
    %v161 = vunpack.c.l.bf16 %v97
    %v162 = vunpack.c.l.bf16 %v98
    %v163 = vunpack.c.l.bf16 %v99
    %v164 = vunpack.c.l.bf16 %v100
    %v165 = vunpack.c.l.bf16 %v101
    %v166 = vunpack.c.l.bf16 %v102
    %v167 = vunpack.c.l.bf16 %v103
    %v168 = vunpack.c.l.bf16 %v104
    %v169 = vunpack.c.l.bf16 %v105
    %v170 = vunpack.c.l.bf16 %v106
    %v171 = vunpack.c.l.bf16 %v107
    %v172 = vunpack.c.l.bf16 %v108
    %v173 = vunpack.c.l.bf16 %v109
    %v174 = vunpack.c.l.bf16 %v110
    %v175 = vunpack.c.l.bf16 %v111
    %v176 = vunpack.c.l.bf16 %v112
    %v177 = vunpack.c.l.bf16 %v113
    %v178 = vunpack.c.l.bf16 %v114
    %v179 = vunpack.c.l.bf16 %v115
    %v180 = vunpack.c.l.bf16 %v116
    %v181 = vunpack.c.l.bf16 %v117
    %v182 = vunpack.c.l.bf16 %v118
    %v183 = vunpack.c.l.bf16 %v119
    %v184 = vunpack.c.l.bf16 %v120
    %v185 = vunpack.c.l.bf16 %v121
    %v186 = vunpack.c.l.bf16 %v122
    %v187 = vunpack.c.l.bf16 %v123
    %v188 = vunpack.c.l.bf16 %v124
    %v189 = vunpack.c.l.bf16 %v125
    %v190 = vunpack.c.l.bf16 %v126
    %v191 = vunpack.c.l.bf16 %v127
    %v192 = vunpack.c.l.bf16 %v128
    %v193 = vunpack.c.l.bf16 %v129
    %v194 = vunpack.c.l.bf16 %v130
    %v195 = vunpack.c.l.bf16 %v131
    %v196 = vunpack.c.l.bf16 %v132
    %v197 = vunpack.c.l.bf16 %v133
    %v198 = vunpack.c.l.bf16 %v134
    %v199 = vunpack.c.l.bf16 %v135
    %v200 = vunpack.c.l.bf16 %v136
    %v201 = vunpack.c.l.bf16 %v137
    %v202 = vunpack.c.l.bf16 %v138
    %v203 = vunpack.c.l.bf16 %v139
    %v204 = vunpack.c.l.bf16 %v140
    %v205 = vunpack.c.l.bf16 %v141
    %v206 = vunpack.c.l.bf16 %v142
    %v207 = vunpack.c.l.bf16 %v143
    %v208 = vunpack.c.l.bf16 %v144
    %v209 = vunpack.c.l.bf16 %v145
    %v210 = vunpack.c.l.bf16 %v146
    %v211 = vunpack.c.l.bf16 %v147
    %v212 = vunpack.c.l.bf16 %v148
    %v213 = vunpack.c.l.bf16 %v149
    %v214 = vunpack.c.l.bf16 %v150
    %v215 = vunpack.c.l.bf16 %v151
    %v216 = vunpack.c.l.bf16 %v152
    %v217 = vunpack.c.l.bf16 %v153
    %v218 = vunpack.c.l.bf16 %v154
    %v219 = vunpack.c.l.bf16 %v155
    %v220 = vunpack.c.l.bf16 %v156
    %v221 = vunpack.c.l.bf16 %v157
    %v222 = vadd.f32 %v158, %v159
    %v223 = vadd.f32 %v222, %v160
    %v224 = vadd.f32 %v223, %v161
    %v225 = vadd.f32 %v224, %v162
    %v226 = vadd.f32 %v225, %v163
    %v227 = vadd.f32 %v226, %v164
    %v228 = vadd.f32 %v227, %v165
    %v229 = vadd.f32 %v228, %v166
    %v230 = vadd.f32 %v229, %v167
    %v231 = vadd.f32 %v230, %v168
    %v232 = vadd.f32 %v231, %v169
    %v233 = vadd.f32 %v232, %v170
    %v234 = vadd.f32 %v233, %v171
    %v235 = vadd.f32 %v234, %v172
    %v236 = vadd.f32 %v235, %v173
    %v237 = vadd.f32 %v236, %v174
    %v238 = vadd.f32 %v237, %v175
    %v239 = vadd.f32 %v238, %v176
    %v240 = vadd.f32 %v239, %v177
    %v241 = vadd.f32 %v240, %v178
    %v242 = vadd.f32 %v241, %v179
    %v243 = vadd.f32 %v242, %v180
    %v244 = vadd.f32 %v243, %v181
    %v245 = vadd.f32 %v244, %v182
    %v246 = vadd.f32 %v245, %v183
    %v247 = vadd.f32 %v246, %v184
    %v248 = vadd.f32 %v247, %v185
    %v249 = vadd.f32 %v248, %v186
    %v250 = vadd.f32 %v249, %v187
    %v251 = vadd.f32 %v250, %v188
    %v252 = vadd.f32 %v251, %v189
    %v253 = vrot.slane %v252, 4
    %v254 = vadd.f32 %v252, %v253
    %v255 = vrot.slane %v254, 2
    %v256 = vadd.f32 %v254, %v255
    %v257 = vrot.slane %v256, 1
    %v258 = vadd.f32 %v256, %v257
    %v259 = vadd.f32 %v190, %v191
    %v260 = vadd.f32 %v259, %v192
    %v261 = vadd.f32 %v260, %v193
    %v262 = vadd.f32 %v261, %v194
    %v263 = vadd.f32 %v262, %v195
    %v264 = vadd.f32 %v263, %v196
    %v265 = vadd.f32 %v264, %v197
    %v266 = vadd.f32 %v265, %v198
    %v267 = vadd.f32 %v266, %v199
    %v268 = vadd.f32 %v267, %v200
    %v269 = vadd.f32 %v268, %v201
    %v270 = vadd.f32 %v269, %v202
    %v271 = vadd.f32 %v270, %v203
    %v272 = vadd.f32 %v271, %v204
    %v273 = vadd.f32 %v272, %v205
    %v274 = vadd.f32 %v273, %v206
    %v275 = vadd.f32 %v274, %v207
    %v276 = vadd.f32 %v275, %v208
    %v277 = vadd.f32 %v276, %v209
    %v278 = vadd.f32 %v277, %v210
    %v279 = vadd.f32 %v278, %v211
    %v280 = vadd.f32 %v279, %v212
    %v281 = vadd.f32 %v280, %v213
    %v282 = vadd.f32 %v281, %v214
    %v283 = vadd.f32 %v282, %v215
    %v284 = vadd.f32 %v283, %v216
    %v285 = vadd.f32 %v284, %v217
    %v286 = vadd.f32 %v285, %v218
    %v287 = vadd.f32 %v286, %v219
    %v288 = vadd.f32 %v287, %v220
    %v289 = vadd.f32 %v288, %v221
    %v290 = vrot.slane %v289, 4
    %v291 = vadd.f32 %v289, %v290
    %v292 = vrot.slane %v291, 2
    %v293 = vadd.f32 %v291, %v292
    %v294 = vrot.slane %v293, 1
    %v295 = vadd.f32 %v293, %v294
    %vm298 = vcmask 1041409
    %v299 = vsel %vm298, %v295, %v258
    %v301 = vadd.f32 %v93, %v299
    %302 = vst [vmem:[#allocation2] sm:$0x3] %v301
    // Predicated region
    $region46: #{tpu_custom_call.1} parent=1 // pred_check
      %p303 = pneg %p88
    $region47: #{tpu_custom_call.1} parent=1 // pred_check_branch
      %305 = sbr.rel (%p303) target = $region49
    $region48: #{tpu_custom_call.1} parent=1 // pred_region
      %v306 = vld [vmem:[#allocation11] sm:$0xff]
      %v307 = vld [vmem:[#allocation2] sm:$0x3]
      %v308 = vmul.f32 %v307, 0.00390625
      %v309 = vpack.c.bf16 %v308, %v308
      %v310 = vld [vmem:[#allocation6] sm:$0xf]
      %v311 = vld [vmem:[#allocation6 + $0x4] sm:$0xf]
      %v312 = vld [vmem:[#allocation6 + $0x8] sm:$0xf]
      %v313 = vld [vmem:[#allocation6 + $0xc] sm:$0xf]
      %v314 = vld [vmem:[#allocation6 + $0x10] sm:$0xf]
      %v315 = vld [vmem:[#allocation6 + $0x14] sm:$0xf]
      %v316 = vld [vmem:[#allocation6 + $0x18] sm:$0xf]
      %v317 = vld [vmem:[#allocation6 + $0x1c] sm:$0xf]
      %v318 = vld [vmem:[#allocation6 + $0x20] sm:$0xf]
      %v319 = vld [vmem:[#allocation6 + $0x24] sm:$0xf]
      %v320 = vld [vmem:[#allocation6 + $0x28] sm:$0xf]
      %v321 = vld [vmem:[#allocation6 + $0x2c] sm:$0xf]
      %v322 = vld [vmem:[#allocation6 + $0x30] sm:$0xf]
      %v323 = vld [vmem:[#allocation6 + $0x34] sm:$0xf]
      %v324 = vld [vmem:[#allocation6 + $0x38] sm:$0xf]
      %v325 = vld [vmem:[#allocation6 + $0x3c] sm:$0xf]
      %v326 = vlaneseq
      %v327 = vshrl.u32 %v326, 7
      %v328 = vsub.s32 0, %v327
      %v329 = vrot.slane %v306, %v328
      %v346 = vunpack.c.l.b16 %v310
      %v347 = vunpack.c.l.b16 %v311
      %v348 = vunpack.c.l.b16 %v312
      %v349 = vunpack.c.l.b16 %v313
      %v350 = vunpack.c.l.b16 %v314
      %v351 = vunpack.c.l.b16 %v315
      %v352 = vunpack.c.l.b16 %v316
      %v353 = vunpack.c.l.b16 %v317
      %v354 = vunpack.c.l.b16 %v318
      %v355 = vunpack.c.l.b16 %v319
      %v356 = vunpack.c.l.b16 %v320
      %v357 = vunpack.c.l.b16 %v321
      %v358 = vunpack.c.l.b16 %v322
      %v359 = vunpack.c.l.b16 %v323
      %v360 = vunpack.c.l.b16 %v324
      %v361 = vunpack.c.l.b16 %v325
      %v362 = vpack.c.b16 %v347, %v346
      %v363 = vpack.c.b16 %v349, %v348
      %v364 = vpack.c.b16 %v351, %v350
      %v365 = vpack.c.b16 %v353, %v352
      %v366 = vpack.c.b16 %v355, %v354
      %v367 = vpack.c.b16 %v357, %v356
      %v368 = vpack.c.b16 %v359, %v358
      %v369 = vpack.c.b16 %v361, %v360
      %378 = vmatprep.subr.bf16.mxu0 0
      %379 = vmatpush1.bf16.msra.mxu0 %v369
      %380 = vmatprep.subr.bf16.mxu0 0
      %381 = vmatpush1.bf16.msra.mxu0 %v368
      %382 = vmatprep.subr.bf16.mxu0 0
      %383 = vmatpush1.bf16.msra.mxu0 %v367
      %384 = vmatprep.subr.bf16.mxu0 0
      %385 = vmatpush1.bf16.msra.mxu0 %v366
      %386 = vmatprep.subr.bf16.mxu0 0
      %387 = vmatpush1.bf16.msra.mxu0 %v365
      %388 = vmatprep.subr.bf16.mxu0 0
      %389 = vmatpush1.bf16.msra.mxu0 %v364
      %390 = vmatprep.subr.bf16.mxu0 0
      %391 = vmatpush1.bf16.msra.mxu0 %v363
      %392 = vmatprep.subr.bf16.mxu0 0
      %393 = vmatpush1.bf16.msra.mxu0 %v362
      %394 = vmatprep.subr.bf16.mxu0 0
      %395 = vmatpush2.bf16.msra.mxu0 0
      %396 = vmatprep.subr.bf16.mxu0 0
      %397 = vmatpush2.bf16.msra.mxu0 0
      %398 = vmatprep.subr.bf16.mxu0 0
      %399 = vmatpush2.bf16.msra.mxu0 0
      %400 = vmatprep.subr.bf16.mxu0 0
      %401 = vmatpush2.bf16.msra.mxu0 0
      %402 = vmatprep.subr.bf16.mxu0 0
      %403 = vmatpush2.bf16.msra.mxu0 0
      %404 = vmatprep.subr.bf16.mxu0 0
      %405 = vmatpush2.bf16.msra.mxu0 0
      %406 = vmatprep.subr.bf16.mxu0 0
      %407 = vmatpush2.bf16.msra.mxu0 0
      %408 = vmatprep.subr.bf16.mxu0 0
      %409 = vmatpush2.bf16.msra.mxu0 0
      %410 = vmatprep.mubr.bf16.mxu0 0
      %411 = vmatmul.mubr.bf16.gmra.mxu0 %v309
      %v412 = vpop.f32.mrf.mxu0
      %v413 = vadd.f32 %v329, %v412
      %v414 = vpop.f32.mrf.mxu0
      %v415 = vpop.f32.mrf.mxu0
      %v416 = vpop.f32.mrf.mxu0
      %417 = vdwg.mxu0
      %vm418 = vcmask 1041408
      %v419 = vsel %vm418, %v413, 0.0
      %420 = vadd.xlane.f32.xlu0 %v419
      %v421 = vpop.xlane.xlu0 %420
      %v422 = vrcp.pop 128.0
      %v423 = vmul.f32 %v421, %v422
      %v424 = vsub.f32 %v413, %v423
      %v425 = vmul.f32 %v424, %v424
      %v426 = vsel %vm418, %v425, 0.0
      %427 = vadd.xlane.f32.xlu0 %v426
      %v428 = vpop.xlane.xlu0 %427
      %v429 = vmul.f32 %v428, %v422
      %v430 = vadd.f32 %v429, 1e-06
      %v431 = vrsqrt.pop %v430
      %v432 = vmul.f32 %v424, %v431
      %v433 = vlaneseq
      %v434 = vshrl.u32 %v433, 7
      %v435 = vsub.s32 1, %v434
      %v436 = vrot.slane %v306, %v435
      %v437 = vmul.f32 %v432, %v436
      %v438 = vlaneseq
      %v439 = vshrl.u32 %v438, 7
      %v440 = vsub.s32 2, %v439
      %v441 = vrot.slane %v306, %v440
      %v442 = vadd.f32 %v437, %v441
      %v443 = vmax.f32 %v442, 0.0
      %v444 = vpack.c.bf16 %v443, %v443
      %v445 = vld [vmem:[#allocation8] sm:$0xf]
      %v446 = vld [vmem:[#allocation8 + $0x4] sm:$0xf]
      %v447 = vld [vmem:[#allocation8 + $0x8] sm:$0xf]
      %v448 = vld [vmem:[#allocation8 + $0xc] sm:$0xf]
      %v449 = vld [vmem:[#allocation8 + $0x10] sm:$0xf]
      %v450 = vld [vmem:[#allocation8 + $0x14] sm:$0xf]
      %v451 = vld [vmem:[#allocation8 + $0x18] sm:$0xf]
      %v452 = vld [vmem:[#allocation8 + $0x1c] sm:$0xf]
      %v453 = vld [vmem:[#allocation8 + $0x20] sm:$0xf]
      %v454 = vld [vmem:[#allocation8 + $0x24] sm:$0xf]
      %v455 = vld [vmem:[#allocation8 + $0x28] sm:$0xf]
      %v456 = vld [vmem:[#allocation8 + $0x2c] sm:$0xf]
      %v457 = vld [vmem:[#allocation8 + $0x30] sm:$0xf]
      %v458 = vld [vmem:[#allocation8 + $0x34] sm:$0xf]
      %v459 = vld [vmem:[#allocation8 + $0x38] sm:$0xf]
      %v460 = vld [vmem:[#allocation8 + $0x3c] sm:$0xf]
      %v461 = vlaneseq
      %v462 = vshrl.u32 %v461, 7
      %v463 = vsub.s32 3, %v462
      %v464 = vrot.slane %v306, %v463
      %v481 = vunpack.c.l.b16 %v445
      %v482 = vunpack.c.l.b16 %v446
      %v483 = vunpack.c.l.b16 %v447
      %v484 = vunpack.c.l.b16 %v448
      %v485 = vunpack.c.l.b16 %v449
      %v486 = vunpack.c.l.b16 %v450
      %v487 = vunpack.c.l.b16 %v451
      %v488 = vunpack.c.l.b16 %v452
      %v489 = vunpack.c.l.b16 %v453
      %v490 = vunpack.c.l.b16 %v454
      %v491 = vunpack.c.l.b16 %v455
      %v492 = vunpack.c.l.b16 %v456
      %v493 = vunpack.c.l.b16 %v457
      %v494 = vunpack.c.l.b16 %v458
      %v495 = vunpack.c.l.b16 %v459
      %v496 = vunpack.c.l.b16 %v460
      %v497 = vpack.c.b16 %v482, %v481
      %v498 = vpack.c.b16 %v484, %v483
      %v499 = vpack.c.b16 %v486, %v485
      %v500 = vpack.c.b16 %v488, %v487
      %v501 = vpack.c.b16 %v490, %v489
      %v502 = vpack.c.b16 %v492, %v491
      %v503 = vpack.c.b16 %v494, %v493
      %v504 = vpack.c.b16 %v496, %v495
      %513 = vmatprep.subr.bf16.mxu0 0
      %514 = vmatpush1.bf16.msra.mxu0 %v504
      %515 = vmatprep.subr.bf16.mxu0 0
      %516 = vmatpush1.bf16.msra.mxu0 %v503
      %517 = vmatprep.subr.bf16.mxu0 0
      %518 = vmatpush1.bf16.msra.mxu0 %v502
      %519 = vmatprep.subr.bf16.mxu0 0
      %520 = vmatpush1.bf16.msra.mxu0 %v501
      %521 = vmatprep.subr.bf16.mxu0 0
      %522 = vmatpush1.bf16.msra.mxu0 %v500
      %523 = vmatprep.subr.bf16.mxu0 0
      %524 = vmatpush1.bf16.msra.mxu0 %v499
      %525 = vmatprep.subr.bf16.mxu0 0
      %526 = vmatpush1.bf16.msra.mxu0 %v498
      %527 = vmatprep.subr.bf16.mxu0 0
      %528 = vmatpush1.bf16.msra.mxu0 %v497
      %529 = vmatprep.subr.bf16.mxu0 0
      %530 = vmatpush2.bf16.msra.mxu0 0
      %531 = vmatprep.subr.bf16.mxu0 0
      %532 = vmatpush2.bf16.msra.mxu0 0
      %533 = vmatprep.subr.bf16.mxu0 0
      %534 = vmatpush2.bf16.msra.mxu0 0
      %535 = vmatprep.subr.bf16.mxu0 0
      %536 = vmatpush2.bf16.msra.mxu0 0
      %537 = vmatprep.subr.bf16.mxu0 0
      %538 = vmatpush2.bf16.msra.mxu0 0
      %539 = vmatprep.subr.bf16.mxu0 0
      %540 = vmatpush2.bf16.msra.mxu0 0
      %541 = vmatprep.subr.bf16.mxu0 0
      %542 = vmatpush2.bf16.msra.mxu0 0
      %543 = vmatprep.subr.bf16.mxu0 0
      %544 = vmatpush2.bf16.msra.mxu0 0
      %545 = vmatprep.mubr.bf16.mxu0 0
      %546 = vmatmul.mubr.bf16.gmra.mxu0 %v444
      %v547 = vpop.f32.mrf.mxu0
      %v548 = vadd.f32 %v464, %v547
      %v549 = vpop.f32.mrf.mxu0
      %v550 = vpop.f32.mrf.mxu0
      %v551 = vpop.f32.mrf.mxu0
      %552 = vdwg.mxu0
      %v553 = vsel %vm418, %v548, 0.0
      %554 = vadd.xlane.f32.xlu0 %v553
      %v555 = vpop.xlane.xlu0 %554
      %v556 = vmul.f32 %v555, %v422
      %v557 = vsub.f32 %v548, %v556
      %v558 = vmul.f32 %v557, %v557
      %v559 = vsel %vm418, %v558, 0.0
      %560 = vadd.xlane.f32.xlu0 %v559
      %v561 = vpop.xlane.xlu0 %560
      %v562 = vmul.f32 %v561, %v422
      %v563 = vadd.f32 %v562, 1e-06
      %v564 = vrsqrt.pop %v563
      %v565 = vmul.f32 %v557, %v564
      %v566 = vlaneseq
      %v567 = vshrl.u32 %v566, 7
      %v568 = vsub.s32 4, %v567
      %v569 = vrot.slane %v306, %v568
      %v570 = vmul.f32 %v565, %v569
      %v571 = vlaneseq
      %v572 = vshrl.u32 %v571, 7
      %v573 = vsub.s32 5, %v572
      %v574 = vrot.slane %v306, %v573
      %v575 = vadd.f32 %v570, %v574
      %v576 = vmax.f32 %v575, 0.0
      %v577 = vpack.c.bf16 %v576, %v576
      %v578 = vld [vmem:[#allocation9] sm:$0xf]
      %v579 = vld [vmem:[#allocation9 + $0x4] sm:$0xf]
      %v580 = vld [vmem:[#allocation9 + $0x8] sm:$0xf]
      %v581 = vld [vmem:[#allocation9 + $0xc] sm:$0xf]
      %v582 = vld [vmem:[#allocation9 + $0x10] sm:$0xf]
      %v583 = vld [vmem:[#allocation9 + $0x14] sm:$0xf]
      %v584 = vld [vmem:[#allocation9 + $0x18] sm:$0xf]
      %v585 = vld [vmem:[#allocation9 + $0x1c] sm:$0xf]
      %v586 = vld [vmem:[#allocation9 + $0x20] sm:$0xf]
      %v587 = vld [vmem:[#allocation9 + $0x24] sm:$0xf]
      %v588 = vld [vmem:[#allocation9 + $0x28] sm:$0xf]
      %v589 = vld [vmem:[#allocation9 + $0x2c] sm:$0xf]
      %v590 = vld [vmem:[#allocation9 + $0x30] sm:$0xf]
      %v591 = vld [vmem:[#allocation9 + $0x34] sm:$0xf]
      %v592 = vld [vmem:[#allocation9 + $0x38] sm:$0xf]
      %v593 = vld [vmem:[#allocation9 + $0x3c] sm:$0xf]
      %v594 = vlaneseq
      %v595 = vshrl.u32 %v594, 7
      %v596 = vsub.s32 6, %v595
      %v597 = vrot.slane %v306, %v596
      %v614 = vunpack.c.l.b16 %v578
      %v615 = vunpack.c.l.b16 %v579
      %v616 = vunpack.c.l.b16 %v580
      %v617 = vunpack.c.l.b16 %v581
      %v618 = vunpack.c.l.b16 %v582
      %v619 = vunpack.c.l.b16 %v583
      %v620 = vunpack.c.l.b16 %v584
      %v621 = vunpack.c.l.b16 %v585
      %v622 = vunpack.c.l.b16 %v586
      %v623 = vunpack.c.l.b16 %v587
      %v624 = vunpack.c.l.b16 %v588
      %v625 = vunpack.c.l.b16 %v589
      %v626 = vunpack.c.l.b16 %v590
      %v627 = vunpack.c.l.b16 %v591
      %v628 = vunpack.c.l.b16 %v592
      %v629 = vunpack.c.l.b16 %v593
      %v630 = vpack.c.b16 %v615, %v614
      %v631 = vpack.c.b16 %v617, %v616
      %v632 = vpack.c.b16 %v619, %v618
      %v633 = vpack.c.b16 %v621, %v620
      %v634 = vpack.c.b16 %v623, %v622
      %v635 = vpack.c.b16 %v625, %v624
      %v636 = vpack.c.b16 %v627, %v626
      %v637 = vpack.c.b16 %v629, %v628
      %646 = vmatprep.subr.bf16.mxu0 0
      %647 = vmatpush1.bf16.msra.mxu0 %v637
      %648 = vmatprep.subr.bf16.mxu0 0
      %649 = vmatpush1.bf16.msra.mxu0 %v636
      %650 = vmatprep.subr.bf16.mxu0 0
      %651 = vmatpush1.bf16.msra.mxu0 %v635
      %652 = vmatprep.subr.bf16.mxu0 0
      %653 = vmatpush1.bf16.msra.mxu0 %v634
      %654 = vmatprep.subr.bf16.mxu0 0
      %655 = vmatpush1.bf16.msra.mxu0 %v633
      %656 = vmatprep.subr.bf16.mxu0 0
      %657 = vmatpush1.bf16.msra.mxu0 %v632
      %658 = vmatprep.subr.bf16.mxu0 0
      %659 = vmatpush1.bf16.msra.mxu0 %v631
      %660 = vmatprep.subr.bf16.mxu0 0
      %661 = vmatpush1.bf16.msra.mxu0 %v630
      %662 = vmatprep.subr.bf16.mxu0 0
      %663 = vmatpush2.bf16.msra.mxu0 0
      %664 = vmatprep.subr.bf16.mxu0 0
      %665 = vmatpush2.bf16.msra.mxu0 0
      %666 = vmatprep.subr.bf16.mxu0 0
      %667 = vmatpush2.bf16.msra.mxu0 0
      %668 = vmatprep.subr.bf16.mxu0 0
      %669 = vmatpush2.bf16.msra.mxu0 0
      %670 = vmatprep.subr.bf16.mxu0 0
      %671 = vmatpush2.bf16.msra.mxu0 0
      %672 = vmatprep.subr.bf16.mxu0 0
      %673 = vmatpush2.bf16.msra.mxu0 0
      %674 = vmatprep.subr.bf16.mxu0 0
      %675 = vmatpush2.bf16.msra.mxu0 0
      %676 = vmatprep.subr.bf16.mxu0 0
      %677 = vmatpush2.bf16.msra.mxu0 0
      %678 = vmatprep.mubr.bf16.mxu0 0
      %679 = vmatmul.mubr.bf16.gmra.mxu0 %v577
      %v680 = vpop.f32.mrf.mxu0
      %v681 = vadd.f32 %v597, %v680
      %v682 = vpop.f32.mrf.mxu0
      %v683 = vpop.f32.mrf.mxu0
      %v684 = vpop.f32.mrf.mxu0
      %685 = vdwg.mxu0
      %686 = vst [vmem:[#allocation12] sm:$0x3] %v681
    $region49: #{tpu_custom_call.1} parent=1 // pred_fallthru
      _
    // Predicated region
    $region50: #{tpu_custom_call.1} parent=1 // pred_check
      _
    $region51: #{tpu_custom_call.1} parent=1 // pred_check_branch
      %688 = sbr.rel (0) target = $region53
    $region52: #{tpu_custom_call.1} parent=1 // pred_region
      %s690 = ssub.s32 32, 32
      %691 = vsyncadd [#allocation5], %s690
      %s693 = sshll.u32 [#allocation12], 4
      %s694 = int_to_ptr.vmem [resolvable:$true] %s693
      %696 = dma.vmem_to_hbm [thread:$0]  %s694, 32, %s5, [#allocation5]
    $region53: #{tpu_custom_call.1} parent=1 // pred_fallthru
      _
    // Predicated region
    $region54: #{tpu_custom_call.1} parent=1 // pred_check
      _
    $region55: #{tpu_custom_call.1} parent=1 // pred_check_branch
      %698 = sbr.rel (0) target = $region57
    $region56: #{tpu_custom_call.1} parent=1 // pred_region
      %699 = dma.done [#allocation5], 32
    $region57: #{tpu_custom_call.1} parent=1 // pred_fallthru
      _
    %700 = vsyncpa [#allocation4], 1
    %701 = vsyncpa [#allocation7], 1
    %702 = vsyncpa [#allocation10], 1
    %703 = vsyncpa [#allocation5], 1

</llo_original>
